<compile_context>
chip_gen: v7x
topology: tpu7x:2x2x1
jax: 0.10.0
libtpu: 0.0.40
codegen_flags: <defaults>
</compile_context>

<pallas_src>
import functools

import jax
import jax.numpy as jnp
from jax.experimental import pallas as pl
from jax.experimental.pallas import tpu as pltpu


# ---------------------------------------------------------------------------
# Kernels
# ---------------------------------------------------------------------------

def _layernorm_rows(y, gamma, beta, eps):
    """Row-wise LayerNorm in f32, one-pass mean / E[y^2] (fewer VPU sweeps)."""
    inv_h = 1.0 / float(y.shape[-1])
    mean = jnp.sum(y, axis=-1, keepdims=True) * inv_h
    meansq = jnp.sum(y * y, axis=-1, keepdims=True) * inv_h
    var = jnp.maximum(meansq - mean * mean, 0.0)      # guard one-pass cancellation
    inv = jax.lax.rsqrt(var + eps)                    # EUP slot (effectively free)
    return (y - mean) * inv * gamma + beta


def _self_output_kernel(x_ref, res_ref, w_ref, b_ref, g_ref, be_ref, o_ref, *, eps):
    # Resident-weight path: w_ref has a constant block index -> DMA'd once and
    # kept in VMEM across the whole grid.
    acc = jnp.dot(x_ref[...], w_ref[...], preferred_element_type=jnp.float32)
    # Dropout: eval-mode identity.
    # TODO(synk): training-mode dropout (pltpu.prng_random_bits mask) not wired in.
    y = acc + (res_ref[...].astype(jnp.float32) + b_ref[...].astype(jnp.float32))
    out = _layernorm_rows(y, g_ref[...].astype(jnp.float32),
                          be_ref[...].astype(jnp.float32), eps)
    o_ref[...] = out.astype(o_ref.dtype)


def _self_output_kernel_ktiled(x_ref, res_ref, w_ref, b_ref, g_ref, be_ref,
                               o_ref, acc_ref, *, eps):
    # K-tiled path for weights too large to keep resident (large H / v7x).
    k = pl.program_id(1)

    @pl.when(k == 0)
    def _init():
        acc_ref[...] = jnp.zeros_like(acc_ref)

    acc_ref[...] += jnp.dot(x_ref[...], w_ref[...],
                            preferred_element_type=jnp.float32)

    @pl.when(k == pl.num_programs(1) - 1)
    def _finalize():
        y = acc_ref[...] + (res_ref[...].astype(jnp.float32)
                            + b_ref[...].astype(jnp.float32))
        out = _layernorm_rows(y, g_ref[...].astype(jnp.float32),
                              be_ref[...].astype(jnp.float32), eps)
        o_ref[...] = out.astype(o_ref.dtype)


# ---------------------------------------------------------------------------
# Wrapper
# ---------------------------------------------------------------------------

def _vmem_capacity_bytes():
    try:
        return int(pltpu.get_tpu_info().vmem_capacity_bytes)
    except Exception:
        return 64 << 20   # conservative: v7x per-TensorCore VMEM


def self_output(hidden_states, input_tensor, dense_w, dense_b,
                ln_gamma, ln_beta, ln_eps, *, tile_m=1024, tile_k=None):
    """Fused dense -> dropout(eval) -> +residual -> LayerNorm.

    hidden_states, input_tensor: [B, S, H]
    dense_w: [H_out, H_in] (PyTorch nn.Linear layout); dense_b/ln_*: [H]
    """
    B, S, H = hidden_states.shape
    M = B * S
    act_dtype = hidden_states.dtype

    x2 = hidden_states.reshape(M, H)
    r2 = input_tensor.reshape(M, H)

    # One-time layout/dtype prep (callers with static weights should hoist
    # this out of the per-step path): [out,in] -> [in,out] for a canonical
    # [M,K]x[K,N] MXU matmul, cast to the activation dtype for full-rate MXU.
    w_t = jnp.asarray(dense_w).T.astype(act_dtype)
    b2 = jnp.asarray(dense_b).reshape(1, H).astype(jnp.float32)
    g2 = jnp.asarray(ln_gamma).reshape(1, H).astype(jnp.float32)
    be2 = jnp.asarray(ln_beta).reshape(1, H).astype(jnp.float32)

    in_itemsize = jnp.dtype(act_dtype).itemsize
    out_itemsize = in_itemsize
    w_itemsize = jnp.dtype(w_t.dtype).itemsize

    sublane = 16 if act_dtype == jnp.bfloat16 else 8

    def round_tm(t):
        return max(sublane, (t // sublane) * sublane)

    # No wrapper-side padding: grid covers M with a (possibly ragged) last
    # block; Pallas only writes back the in-bounds rows of that block.
    m_rounded = pl.cdiv(M, sublane) * sublane
    tile_m = round_tm(min(int(tile_m), m_rounded))

    capacity = _vmem_capacity_bytes()
    budget = (capacity * 3) // 4          # headroom for compiler scratch / spills

    vec_bytes = 3 * H * 4                 # bias / gamma / beta (f32)

    def vmem_resident(tm):
        # Weight budgeted 2x: the constant-index spec may still be double-buffered.
        return (2 * H * H * w_itemsize
                + 2 * 2 * tm * H * in_itemsize     # x + residual, double-buffered
                + 2 * tm * H * out_itemsize        # output, double-buffered
                + vec_bytes)

    def vmem_ktiled(tm, tk):
        return (2 * tm * tk * in_itemsize          # x K-slab, double-buffered
                + 2 * tk * H * w_itemsize          # weight K-slab, double-buffered
                + 2 * tm * H * in_itemsize         # residual, double-buffered
                + 2 * tm * H * out_itemsize        # output, double-buffered
                + tm * H * 4                       # f32 accumulator scratch
                + vec_bytes)

    use_ktiled = tile_k is not None
    if not use_ktiled:
        # Shrink tile_m if only marginally over budget with the resident weight.
        while vmem_resident(tile_m) > budget and tile_m > 8 * sublane:
            tile_m = round_tm(tile_m // 2)
        if vmem_resident(tile_m) > budget:
            # Resident (H, H) weight does not fit (e.g. large H on v7x): K-tile.
            for cand in (2048, 1024, 512, 256, 128):
                if H % cand == 0 and cand < H:
                    tile_k = cand
                    use_ktiled = True
                    break
            # TODO(synk): if H is not a multiple of 128 and the weight is over
            # budget, we fall back to the resident path and rely on the compiler.

    if use_ktiled:
        assert H % tile_k == 0, (
            "tile_k must divide H (partial K blocks would accumulate garbage)")
        while vmem_ktiled(tile_m, tile_k) > budget and tile_m > 8 * sublane:
            tile_m = round_tm(tile_m // 2)

    num_m = pl.cdiv(M, tile_m)
    # Megacore (v7x has 2 TCs): prefer an even grid along the parallel axis.
    if num_m > 1 and num_m % 2 == 1:
        alt = -(-M // (num_m + 1))              # ceil(M / (num_m + 1))
        alt = -(-alt // sublane) * sublane      # round up to sublane multiple
        if alt >= sublane and pl.cdiv(M, alt) % 2 == 0:
            tile_m = alt
            num_m = pl.cdiv(M, alt)

    if not use_ktiled:
        vmem_needed = vmem_resident(tile_m)
        grid = (num_m,)
        in_specs = [
            pl.BlockSpec((tile_m, H), lambda i: (i, 0)),    # x tile
            pl.BlockSpec((tile_m, H), lambda i: (i, 0)),    # residual tile
            pl.BlockSpec((H, H), lambda i: (0, 0)),         # weight (VMEM-resident)
            pl.BlockSpec((1, H), lambda i: (0, 0)),         # bias
            pl.BlockSpec((1, H), lambda i: (0, 0)),         # gamma
            pl.BlockSpec((1, H), lambda i: (0, 0)),         # beta
        ]
        out_specs = pl.BlockSpec((tile_m, H), lambda i: (i, 0))
        scratch_shapes = []
        kernel = functools.partial(_self_output_kernel, eps=float(ln_eps))
        dim_sem = ("parallel",)
    else:
        vmem_needed = vmem_ktiled(tile_m, tile_k)
        grid = (num_m, H // tile_k)                         # reduction axis last
        in_specs = [
            pl.BlockSpec((tile_m, tile_k), lambda i, k: (i, k)),   # x K-slab
            pl.BlockSpec((tile_m, H), lambda i, k: (i, 0)),        # residual
            pl.BlockSpec((tile_k, H), lambda i, k: (k, 0)),        # weight K-slab
            pl.BlockSpec((1, H), lambda i, k: (0, 0)),             # bias
            pl.BlockSpec((1, H), lambda i, k: (0, 0)),             # gamma
            pl.BlockSpec((1, H), lambda i, k: (0, 0)),             # beta
        ]
        out_specs = pl.BlockSpec((tile_m, H), lambda i, k: (i, 0))
        scratch_shapes = [pltpu.VMEM((tile_m, H), jnp.float32)]
        kernel = functools.partial(_self_output_kernel_ktiled, eps=float(ln_eps))
        dim_sem = ("parallel", "arbitrary")

    vmem_limit = int(min(max(vmem_needed * 5 // 4, 16 << 20),
                         capacity - (2 << 20)))

    out = pl.pallas_call(
        kernel,
        out_shape=jax.ShapeDtypeStruct((M, H), act_dtype),
        grid_spec=pltpu.PrefetchScalarGridSpec(
            num_scalar_prefetch=0,
            grid=grid,
            in_specs=in_specs,
            out_specs=out_specs,
            scratch_shapes=scratch_shapes,
        ),
        compiler_params=pltpu.CompilerParams(
            dimension_semantics=dim_sem,
            vmem_limit_bytes=vmem_limit,
        ),
    )(x2, r2, w_t, b2, g2, be2)

    return out.reshape(B, S, H)


# ---------------------------------------------------------------------------
# Pure-JAX reference + tests
# ---------------------------------------------------------------------------

def reference(hidden_states, input_tensor, dense_w, dense_b, ln_gamma, ln_beta, eps):
    x = hidden_states.astype(jnp.float32)
    r = input_tensor.astype(jnp.float32)
    w = jnp.asarray(dense_w).astype(jnp.float32)
    y = jnp.einsum("bsh,oh->bso", x, w) + jnp.asarray(dense_b).astype(jnp.float32)
    y = y + r
    mean = jnp.mean(y, axis=-1, keepdims=True)
    var = jnp.mean((y - mean) ** 2, axis=-1, keepdims=True)
    return (y - mean) / jnp.sqrt(var + eps) * ln_gamma + ln_beta


if __name__ == "__main__":
    eps = 1e-12
    key = jax.random.PRNGKey(0)

    def make_inputs(k, B, S, H, dtype):
        k1, k2, k3, k4 = jax.random.split(k, 4)
        x = jax.random.normal(k1, (B, S, H), dtype=jnp.float32).astype(dtype)
        r = jax.random.normal(k2, (B, S, H), dtype=jnp.float32).astype(dtype)
        bound = 1.0 / (H ** 0.5)
        w = jax.random.uniform(k3, (H, H), minval=-bound, maxval=bound,
                               dtype=jnp.float32)
        b = jax.random.uniform(k4, (H,), minval=-bound, maxval=bound,
                               dtype=jnp.float32)
        g = jnp.linspace(0.5, 1.5, H, dtype=jnp.float32)
        be = jnp.linspace(-0.1, 0.1, H, dtype=jnp.float32)
        return x, r, w, b, g, be

    k0, k1_, k2_ = jax.random.split(key, 3)

    # 1) f32, resident-weight path (single M grid axis).
    x, r, w, b, g, be = make_inputs(k0, 2, 8, 128, jnp.float32)
    out = jax.block_until_ready(self_output(x, r, w, b, g, be, eps))
    ref = reference(x, r, w, b, g, be, eps)
    assert out.shape == x.shape
    assert jnp.allclose(out, ref, atol=1e-4, rtol=1e-4), "f32 resident path mismatch"

    # 2) f32, forced K-tiled path with a ragged last M tile (M=48, tile_m=32).
    x, r, w, b, g, be = make_inputs(k1_, 2, 24, 256, jnp.float32)
    out = jax.block_until_ready(
        self_output(x, r, w, b, g, be, eps, tile_m=32, tile_k=128))
    ref = reference(x, r, w, b, g, be, eps)
    assert jnp.allclose(out, ref, atol=1e-4, rtol=1e-4), "f32 K-tiled path mismatch"

    # 3) bf16 activations + bf16 resident weight (full-rate MXU path).
    x, r, w, b, g, be = make_inputs(k2_, 2, 8, 128, jnp.bfloat16)
    wb = w.astype(jnp.bfloat16)
    out = jax.block_until_ready(self_output(x, r, wb, b, g, be, eps))
    ref = reference(x, r, wb, b, g, be, eps)
    assert jnp.allclose(out.astype(jnp.float32), ref, atol=3e-2, rtol=3e-2), \
        "bf16 path mismatch"

    print("KERNEL_OK")
</pallas_src>

<mosaic_0001>
module attributes {stable_mosaic.version = 11 : i64} {
  func.func @_self_output_kernel(%arg0: i32, %arg1: memref<16x128xf32, #tpu.memory_space<vmem>>, %arg2: memref<16x128xf32, #tpu.memory_space<vmem>>, %arg3: memref<128x128xf32, #tpu.memory_space<vmem>>, %arg4: memref<1x128xf32, #tpu.memory_space<vmem>>, %arg5: memref<1x128xf32, #tpu.memory_space<vmem>>, %arg6: memref<1x128xf32, #tpu.memory_space<vmem>>, %arg7: memref<16x128xf32, #tpu.memory_space<vmem>>) attributes {dimension_semantics = [#tpu.dimension_semantics<parallel>], iteration_bounds = array<i64: 1>, scalar_prefetch = 0 : i64, scratch_operands = 0 : i64, tpu.core_type = #tpu.core_type<tc>, window_params = [{transform_indices = @transform_0, window_bounds = array<i64: 16, 128>}, {transform_indices = @transform_1, window_bounds = array<i64: 16, 128>}, {pipeline_mode = #tpu.pipeline_mode<synchronous>, transform_indices = @transform_2, window_bounds = array<i64: 128, 128>}, {pipeline_mode = #tpu.pipeline_mode<synchronous>, transform_indices = @transform_3, window_bounds = array<i64: 1, 128>}, {pipeline_mode = #tpu.pipeline_mode<synchronous>, transform_indices = @transform_4, window_bounds = array<i64: 1, 128>}, {pipeline_mode = #tpu.pipeline_mode<synchronous>, transform_indices = @transform_5, window_bounds = array<i64: 1, 128>}, {transform_indices = @transform_6, window_bounds = array<i64: 16, 128>}]} {
    %c0 = arith.constant 0 : index
    %c0_0 = arith.constant 0 : index
    %0 = vector.load %arg1[%c0, %c0_0] : memref<16x128xf32, #tpu.memory_space<vmem>>, vector<16x128xf32>
    %c0_1 = arith.constant 0 : index
    %c0_2 = arith.constant 0 : index
    %1 = vector.load %arg3[%c0_1, %c0_2] : memref<128x128xf32, #tpu.memory_space<vmem>>, vector<128x128xf32>
    %cst = arith.constant dense<0.000000e+00> : vector<16x128xf32>
    %2 = tpu.matmul %0, %1, %cst {dimension_numbers = #tpu.dot_dimension_numbers<[1], [0], [0], [1], [0, 0, 1, 1], [], []>} : vector<16x128xf32>, vector<128x128xf32>, vector<16x128xf32> -> vector<16x128xf32>
    %c0_3 = arith.constant 0 : index
    %c0_4 = arith.constant 0 : index
    %3 = vector.load %arg2[%c0_3, %c0_4] : memref<16x128xf32, #tpu.memory_space<vmem>>, vector<16x128xf32>
    %c0_5 = arith.constant 0 : index
    %c0_6 = arith.constant 0 : index
    %4 = vector.load %arg4[%c0_5, %c0_6] : memref<1x128xf32, #tpu.memory_space<vmem>>, vector<1x128xf32>
    %5 = vector.broadcast %4 : vector<1x128xf32> to vector<16x128xf32>
    %6 = arith.addf %3, %5 : vector<16x128xf32>
    %7 = arith.addf %2, %6 : vector<16x128xf32>
    %c0_7 = arith.constant 0 : index
    %c0_8 = arith.constant 0 : index
    %8 = vector.load %arg5[%c0_7, %c0_8] : memref<1x128xf32, #tpu.memory_space<vmem>>, vector<1x128xf32>
    %c0_9 = arith.constant 0 : index
    %c0_10 = arith.constant 0 : index
    %9 = vector.load %arg6[%c0_9, %c0_10] : memref<1x128xf32, #tpu.memory_space<vmem>>, vector<1x128xf32>
    %cst_11 = arith.constant dense<0.000000e+00> : vector<16xf32>
    %10 = vector.multi_reduction <add>, %7, %cst_11 [1] : vector<16x128xf32> to vector<16xf32>
    %11 = vector.shape_cast %10 : vector<16xf32> to vector<16x1xf32>
    %cst_12 = arith.constant 7.812500e-03 : f32
    %12 = vector.broadcast %cst_12 : f32 to vector<16x1xf32>
    %13 = arith.mulf %11, %12 : vector<16x1xf32>
    %14 = arith.mulf %7, %7 : vector<16x128xf32>
    %cst_13 = arith.constant dense<0.000000e+00> : vector<16xf32>
    %15 = vector.multi_reduction <add>, %14, %cst_13 [1] : vector<16x128xf32> to vector<16xf32>
    %16 = vector.shape_cast %15 : vector<16xf32> to vector<16x1xf32>
    %cst_14 = arith.constant 7.812500e-03 : f32
    %17 = vector.broadcast %cst_14 : f32 to vector<16x1xf32>
    %18 = arith.mulf %16, %17 : vector<16x1xf32>
    %19 = arith.mulf %13, %13 : vector<16x1xf32>
    %20 = arith.subf %18, %19 : vector<16x1xf32>
    %cst_15 = arith.constant 0.000000e+00 : f32
    %21 = vector.broadcast %cst_15 : f32 to vector<16x1xf32>
    %22 = arith.maximumf %20, %21 : vector<16x1xf32>
    %cst_16 = arith.constant 9.99999996E-13 : f32
    %23 = vector.broadcast %cst_16 : f32 to vector<16x1xf32>
    %24 = arith.addf %22, %23 : vector<16x1xf32>
    %25 = math.rsqrt %24 : vector<16x1xf32>
    %26 = vector.broadcast %13 : vector<16x1xf32> to vector<16x128xf32>
    %27 = arith.subf %7, %26 : vector<16x128xf32>
    %28 = vector.broadcast %25 : vector<16x1xf32> to vector<16x128xf32>
    %29 = arith.mulf %27, %28 : vector<16x128xf32>
    %30 = vector.broadcast %8 : vector<1x128xf32> to vector<16x128xf32>
    %31 = arith.mulf %29, %30 : vector<16x128xf32>
    %32 = vector.broadcast %9 : vector<1x128xf32> to vector<16x128xf32>
    %33 = arith.addf %31, %32 : vector<16x128xf32>
    %c0_17 = arith.constant 0 : index
    %c0_18 = arith.constant 0 : index
    %34 = vector.load %arg7[%c0_17, %c0_18] : memref<16x128xf32, #tpu.memory_space<vmem>>, vector<16x128xf32>
    tpu.vector_store %arg7[%c0_17, %c0_18], %33 {strides = array<i32>} : memref<16x128xf32, #tpu.memory_space<vmem>>, vector<16x128xf32>,
    return
  }
  func.func @transform_0(%arg0: i32) -> (i32, i32) {
    %c0_i32 = arith.constant 0 : i32
    %c0_i32_0 = arith.constant 0 : i32
    return %arg0, %c0_i32 : i32, i32
  }
  func.func @transform_1(%arg0: i32) -> (i32, i32) {
    %c0_i32 = arith.constant 0 : i32
    %c0_i32_0 = arith.constant 0 : i32
    return %arg0, %c0_i32 : i32, i32
  }
  func.func @transform_2(%arg0: i32) -> (i32, i32) {
    %c0_i32 = arith.constant 0 : i32
    %c0_i32_0 = arith.constant 0 : i32
    %c0_i32_1 = arith.constant 0 : i32
    return %c0_i32, %c0_i32_0 : i32, i32
  }
  func.func @transform_3(%arg0: i32) -> (i32, i32) {
    %c0_i32 = arith.constant 0 : i32
    %c0_i32_0 = arith.constant 0 : i32
    %c0_i32_1 = arith.constant 0 : i32
    return %c0_i32, %c0_i32_0 : i32, i32
  }
  func.func @transform_4(%arg0: i32) -> (i32, i32) {
    %c0_i32 = arith.constant 0 : i32
    %c0_i32_0 = arith.constant 0 : i32
    %c0_i32_1 = arith.constant 0 : i32
    return %c0_i32, %c0_i32_0 : i32, i32
  }
  func.func @transform_5(%arg0: i32) -> (i32, i32) {
    %c0_i32 = arith.constant 0 : i32
    %c0_i32_0 = arith.constant 0 : i32
    %c0_i32_1 = arith.constant 0 : i32
    return %c0_i32, %c0_i32_0 : i32, i32
  }
  func.func @transform_6(%arg0: i32) -> (i32, i32) {
    %c0_i32 = arith.constant 0 : i32
    %c0_i32_0 = arith.constant 0 : i32
    return %arg0, %c0_i32 : i32, i32
  }
}

</mosaic_0001>

<llo_original>
// kernel: tpu_custom_call.1
$region0: #{tpu_custom_call.1}
  #allocation0 [shape = 'u32[]', space=smem, size = 0x4, offset = 0x4, fixed_abs, tag = 'smem constant byte address 0x4 - core index']
  #allocation1 [shape = 'u32[144,128]{1,0:T(1,128)}', space=vmem, size = 0x12000, scoped, tag = 'internal scratch']
  %s0 = inlined_call_operand.hbm [shape: f32[16,128], index: 0, kind: input, shape index: {}]
  %s1 = inlined_call_operand.hbm [shape: f32[16,128], index: 1, kind: input, shape index: {}]
  %s2 = inlined_call_operand.hbm [shape: f32[128,128], index: 2, kind: input, shape index: {}]
  %s3 = inlined_call_operand.vmem [shape: f32[1,128], index: 3, kind: input, shape index: {}]
  %s4 = inlined_call_operand.vmem [shape: f32[1,128], index: 4, kind: input, shape index: {}]
  %s5 = inlined_call_operand.vmem [shape: f32[1,128], index: 5, kind: input, shape index: {}]
  %s6 = inlined_call_operand.hbm [shape: f32[16,128], index: 6, kind: output, shape index: {}]
  %s7 = sld [smem:[#allocation0]]
  $region46: #{tpu_custom_call.1} parent=0
    _
  %s9 = ssub.s32 1, %s7
  %s10 = scalar_select 0, %s9, %s7
  $region1: #{tpu_custom_call.1} parent=0
    #allocation2 [shape = 'u8[8192]{0}', space=vmem, size = 0x2000, scoped, tag = 'input window, operand 0, single buffered']
    #allocation3 [shape = 's32[1]{0}', space=sflag, size = 0x4, scoped, tag = 'scoped memory for tpu_custom_call.1']
    #allocation4 [shape = 's32[1]{0}', space=sflag, size = 0x4, scoped, tag = 'scoped memory for tpu_custom_call.1']
    #allocation5 [shape = 'u8[8192]{0}', space=vmem, size = 0x2000, scoped, tag = 'input window, operand 1, single buffered']
    #allocation6 [shape = 's32[1]{0}', space=sflag, size = 0x4, scoped, tag = 'scoped memory for tpu_custom_call.1']
    #allocation7 [shape = 'u8[65536]{0}', space=vmem, size = 0x10000, scoped, tag = 'input window, operand 2, single buffered']
    #allocation8 [shape = 'u8[8192]{0}', space=vmem, size = 0x2000, scoped, tag = 'output window, operand 0, single buffered']
    %11 = vsyncpa [#allocation3], 0
    %12 = vsyncpa [#allocation6], 0
    %13 = vsyncpa [#allocation4], 0
    // Predicated region
    $region2: #{tpu_custom_call.1} parent=1 // pred_check
      _
    $region3: #{tpu_custom_call.1} parent=1 // pred_check_branch
      %15 = sbr.rel (0) target = $region5
    $region4: #{tpu_custom_call.1} parent=1 // pred_region
      %s17 = ssub.s32 256, 256
      %18 = vsyncadd [#allocation3], %s17
      %s19 = sshll.u32 [#allocation2], 4
      %s20 = int_to_ptr.vmem [resolvable:$true] %s19
      %25 = dma.hbm_to_vmem [thread:$0]  %s0, 256, %s20, [#allocation3], 128, 128, 8
    $region5: #{tpu_custom_call.1} parent=1 // pred_fallthru
      _
    // Predicated region
    $region6: #{tpu_custom_call.1} parent=1 // pred_check
      _
    $region7: #{tpu_custom_call.1} parent=1 // pred_check_branch
      %27 = sbr.rel (0) target = $region9
    $region8: #{tpu_custom_call.1} parent=1 // pred_region
      %s29 = ssub.s32 256, 256
      %30 = vsyncadd [#allocation6], %s29
      %s31 = sshll.u32 [#allocation5], 4
      %s32 = int_to_ptr.vmem [resolvable:$true] %s31
      %37 = dma.hbm_to_vmem [thread:$0]  %s1, 256, %s32, [#allocation6], 128, 128, 8
    $region9: #{tpu_custom_call.1} parent=1 // pred_fallthru
      _
    // Predicated region
    $region10: #{tpu_custom_call.1} parent=1 // pred_check
      _
    $region11: #{tpu_custom_call.1} parent=1 // pred_check_branch
      %39 = sbr.rel (0) target = $region13
    $region12: #{tpu_custom_call.1} parent=1 // pred_region
      %s41 = ssub.s32 2048, 2048
      %42 = vsyncadd [#allocation6], %s41
      %s43 = sshll.u32 [#allocation7], 4
      %s44 = int_to_ptr.vmem [resolvable:$true] %s43
      %49 = dma.hbm_to_vmem [thread:$0]  %s2, 2048, %s44, [#allocation6], 128, 128, 8
    $region13: #{tpu_custom_call.1} parent=1 // pred_fallthru
      _
    // Predicated region
    $region14: #{tpu_custom_call.1} parent=1 // pred_check
      _
    $region15: #{tpu_custom_call.1} parent=1 // pred_check_branch
      %51 = sbr.rel (0) target = $region17
    $region16: #{tpu_custom_call.1} parent=1 // pred_region
      _
    $region17: #{tpu_custom_call.1} parent=1 // pred_fallthru
      _
    // Predicated region
    $region18: #{tpu_custom_call.1} parent=1 // pred_check
      _
    $region19: #{tpu_custom_call.1} parent=1 // pred_check_branch
      %53 = sbr.rel (0) target = $region21
    $region20: #{tpu_custom_call.1} parent=1 // pred_region
      _
    $region21: #{tpu_custom_call.1} parent=1 // pred_fallthru
      _
    // Predicated region
    $region22: #{tpu_custom_call.1} parent=1 // pred_check
      _
    $region23: #{tpu_custom_call.1} parent=1 // pred_check_branch
      %55 = sbr.rel (0) target = $region25
    $region24: #{tpu_custom_call.1} parent=1 // pred_region
      _
    $region25: #{tpu_custom_call.1} parent=1 // pred_fallthru
      _
    // Predicated region
    $region26: #{tpu_custom_call.1} parent=1 // pred_check
      _
    $region27: #{tpu_custom_call.1} parent=1 // pred_check_branch
      %57 = sbr.rel (0) target = $region29
    $region28: #{tpu_custom_call.1} parent=1 // pred_region
      %58 = dma.done [#allocation3], 256
    $region29: #{tpu_custom_call.1} parent=1 // pred_fallthru
      _
    // Predicated region
    $region30: #{tpu_custom_call.1} parent=1 // pred_check
      _
    $region31: #{tpu_custom_call.1} parent=1 // pred_check_branch
      %60 = sbr.rel (0) target = $region33
    $region32: #{tpu_custom_call.1} parent=1 // pred_region
      %61 = dma.done [#allocation6], 256
    $region33: #{tpu_custom_call.1} parent=1 // pred_fallthru
      _
    // Predicated region
    $region34: #{tpu_custom_call.1} parent=1 // pred_check
      _
    $region35: #{tpu_custom_call.1} parent=1 // pred_check_branch
      %63 = sbr.rel (0) target = $region37
    $region36: #{tpu_custom_call.1} parent=1 // pred_region
      %64 = dma.done [#allocation6], 2048
    $region37: #{tpu_custom_call.1} parent=1 // pred_fallthru
      _
    %v65 = vld [vmem:[#allocation2] sm:$0xff]
    %v66 = vld [vmem:[#allocation2 + $0x8] sm:$0xff]
    %v67 = vld [vmem:[#allocation7] sm:$0xff]
    %v68 = vld [vmem:[#allocation7 + $0x8] sm:$0xff]
    %v69 = vld [vmem:[#allocation7 + $0x10] sm:$0xff]
    %v70 = vld [vmem:[#allocation7 + $0x18] sm:$0xff]
    %v71 = vld [vmem:[#allocation7 + $0x20] sm:$0xff]
    %v72 = vld [vmem:[#allocation7 + $0x28] sm:$0xff]
    %v73 = vld [vmem:[#allocation7 + $0x30] sm:$0xff]
    %v74 = vld [vmem:[#allocation7 + $0x38] sm:$0xff]
    %v75 = vld [vmem:[#allocation7 + $0x40] sm:$0xff]
    %v76 = vld [vmem:[#allocation7 + $0x48] sm:$0xff]
    %v77 = vld [vmem:[#allocation7 + $0x50] sm:$0xff]
    %v78 = vld [vmem:[#allocation7 + $0x58] sm:$0xff]
    %v79 = vld [vmem:[#allocation7 + $0x60] sm:$0xff]
    %v80 = vld [vmem:[#allocation7 + $0x68] sm:$0xff]
    %v81 = vld [vmem:[#allocation7 + $0x70] sm:$0xff]
    %v82 = vld [vmem:[#allocation7 + $0x78] sm:$0xff]
    %v83 = vld [vmem:[#allocation5] sm:$0xff]
    %v84 = vld [vmem:[#allocation5 + $0x8] sm:$0xff]
    %v85 = vld [vmem:[%s3] sm:$0x1]
    %v87 = vlaneseq
    %v88 = vshrl.u32 %v87, 7
    %v89 = vsub.s32 0, %v88
    %v90 = vrot.slane %v85, %v89
    %v92 = vadd.f32 %v83, %v90
    %v93 = vadd.f32 %v84, %v90
    %94 = vmatprep.subr.mxu0 0.0
    %95 = vmatpush1.msra.mxu0 %v67
    %96 = vmatprep.subr.mxu0 0.0
    %97 = vmatpush1.msra.mxu0 %v68
    %98 = vmatprep.subr.mxu0 0.0
    %99 = vmatpush1.msra.mxu0 %v69
    %100 = vmatprep.subr.mxu0 0.0
    %101 = vmatpush1.msra.mxu0 %v70
    %102 = vmatprep.subr.mxu0 0.0
    %103 = vmatpush1.msra.mxu0 %v71
    %104 = vmatprep.subr.mxu0 0.0
    %105 = vmatpush1.msra.mxu0 %v72
    %106 = vmatprep.subr.mxu0 0.0
    %107 = vmatpush1.msra.mxu0 %v73
    %108 = vmatprep.subr.mxu0 0.0
    %109 = vmatpush1.msra.mxu0 %v74
    %110 = vmatprep.subr.mxu0 0.0
    %111 = vmatpush1.msra.mxu0 %v75
    %112 = vmatprep.subr.mxu0 0.0
    %113 = vmatpush1.msra.mxu0 %v76
    %114 = vmatprep.subr.mxu0 0.0
    %115 = vmatpush1.msra.mxu0 %v77
    %116 = vmatprep.subr.mxu0 0.0
    %117 = vmatpush1.msra.mxu0 %v78
    %118 = vmatprep.subr.mxu0 0.0
    %119 = vmatpush1.msra.mxu0 %v79
    %120 = vmatprep.subr.mxu0 0.0
    %121 = vmatpush1.msra.mxu0 %v80
    %122 = vmatprep.subr.mxu0 0.0
    %123 = vmatpush1.msra.mxu0 %v81
    %124 = vmatprep.subr.mxu0 0.0
    %125 = vmatpush1.msra.mxu0 %v82
    %126 = vmatprep.subr.mxu0 0.0
    %127 = vmatpush1.msra.mxu0 0.0
    %128 = vmatprep.subr.mxu0 0.0
    %129 = vmatpush1.msra.mxu0 0.0
    %130 = vmatprep.subr.mxu0 0.0
    %131 = vmatpush1.msra.mxu0 0.0
    %132 = vmatprep.subr.mxu0 0.0
    %133 = vmatpush1.msra.mxu0 0.0
    %134 = vmatprep.subr.mxu0 0.0
    %135 = vmatpush1.msra.mxu0 0.0
    %136 = vmatprep.subr.mxu0 0.0
    %137 = vmatpush1.msra.mxu0 0.0
    %138 = vmatprep.subr.mxu0 0.0
    %139 = vmatpush1.msra.mxu0 0.0
    %140 = vmatprep.subr.mxu0 0.0
    %141 = vmatpush1.msra.mxu0 0.0
    %142 = vmatprep.subr.mxu0 0.0
    %143 = vmatpush1.msra.mxu0 0.0
    %144 = vmatprep.subr.mxu0 0.0
    %145 = vmatpush1.msra.mxu0 0.0
    %146 = vmatprep.subr.mxu0 0.0
    %147 = vmatpush1.msra.mxu0 0.0
    %148 = vmatprep.subr.mxu0 0.0
    %149 = vmatpush1.msra.mxu0 0.0
    %150 = vmatprep.subr.mxu0 0.0
    %151 = vmatpush1.msra.mxu0 0.0
    %152 = vmatprep.subr.mxu0 0.0
    %153 = vmatpush1.msra.mxu0 0.0
    %154 = vmatprep.subr.mxu0 0.0
    %155 = vmatpush1.msra.mxu0 0.0
    %156 = vmatprep.subr.mxu0 0.0
    %157 = vmatpush1.msra.mxu0 0.0
    %158 = vmatprep.mubr.f32.mxu0 0.0
    %159 = vmatmul.mubr.f32.gmra.mrb[0].mxu0 %v65
    %v160 = vpop.f32.mrb[0].mxu0
    %v161 = vadd.f32 %v92, %v160
    %v162 = vpop.f32.mrb[0].mxu0
    %163 = vmatprep.mubr.f32.mxu0 0.0
    %164 = vmatmul.mubr.f32.gmra.mrb[0].mxu0 %v66
    %v165 = vpop.f32.mrb[0].mxu0
    %v166 = vadd.f32 %v93, %v165
    %v167 = vpop.f32.mrb[0].mxu0
    %168 = vdwg.mxu0
    %v169 = vld [vmem:[%s4] sm:$0x1]
    %v170 = vld [vmem:[%s5] sm:$0x1]
    %171 = vadd.xlane.f32.xlu0 %v161
    %v172 = vpop.xlane.xlu0 %171
    %173 = vadd.xlane.f32.xlu0 %v166
    %v174 = vpop.xlane.xlu0 %173
    %v175 = vmul.f32 %v172, 0.0078125
    %v176 = vmul.f32 %v174, 0.0078125
    %v177 = vmul.f32 %v161, %v161
    %v178 = vmul.f32 %v166, %v166
    %179 = vadd.xlane.f32.xlu0 %v177
    %v180 = vpop.xlane.xlu0 %179
    %181 = vadd.xlane.f32.xlu0 %v178
    %v182 = vpop.xlane.xlu0 %181
    %v183 = vmul.f32 %v180, 0.0078125
    %v184 = vmul.f32 %v182, 0.0078125
    %v185 = vmul.f32 %v175, %v175
    %v186 = vmul.f32 %v176, %v176
    %v187 = vsub.f32 %v183, %v185
    %v188 = vsub.f32 %v184, %v186
    %v189 = vmax.f32 %v187, 0.0
    %v190 = vmax.f32 %v188, 0.0
    %v191 = vadd.f32 %v189, 1e-12
    %v192 = vadd.f32 %v190, 1e-12
    %v193 = vrsqrt.pop %v191
    %v194 = vrsqrt.pop %v192
    %v195 = vsub.f32 %v161, %v175
    %v196 = vsub.f32 %v166, %v176
    %v197 = vmul.f32 %v195, %v193
    %v198 = vmul.f32 %v196, %v194
    %v200 = vlaneseq
    %v201 = vshrl.u32 %v200, 7
    %v202 = vsub.s32 0, %v201
    %v203 = vrot.slane %v169, %v202
    %v205 = vmul.f32 %v197, %v203
    %v206 = vmul.f32 %v198, %v203
    %v208 = vlaneseq
    %v209 = vshrl.u32 %v208, 7
    %v210 = vsub.s32 0, %v209
    %v211 = vrot.slane %v170, %v210
    %v213 = vadd.f32 %v205, %v211
    %v214 = vadd.f32 %v206, %v211
    %215 = vst [vmem:[#allocation8] sm:$0xff] %v213
    %216 = vst [vmem:[#allocation8 + $0x8] sm:$0xff] %v214
    // Predicated region
    $region38: #{tpu_custom_call.1} parent=1 // pred_check
      _
    $region39: #{tpu_custom_call.1} parent=1 // pred_check_branch
      %218 = sbr.rel (0) target = $region41
    $region40: #{tpu_custom_call.1} parent=1 // pred_region
      %s220 = ssub.s32 256, 256
      %221 = vsyncadd [#allocation4], %s220
      %s222 = sshll.u32 [#allocation8], 4
      %s223 = int_to_ptr.vmem [resolvable:$true] %s222
      %228 = dma.vmem_to_hbm [thread:$0]  %s223, 256, %s6, [#allocation4], 128, 128, 8
    $region41: #{tpu_custom_call.1} parent=1 // pred_fallthru
      _
    // Predicated region
    $region42: #{tpu_custom_call.1} parent=1 // pred_check
      _
    $region43: #{tpu_custom_call.1} parent=1 // pred_check_branch
      %230 = sbr.rel (0) target = $region45
    $region44: #{tpu_custom_call.1} parent=1 // pred_region
      %231 = dma.done [#allocation4], 256
    $region45: #{tpu_custom_call.1} parent=1 // pred_fallthru
      _
    %232 = vsyncpa [#allocation3], 1
    %233 = vsyncpa [#allocation6], 1
    %234 = vsyncpa [#allocation4], 1

</llo_original>
